<compile_context>
chip_gen: v5e
topology: v5e:2x2
jax: 0.10.0
libtpu: 0.0.40
codegen_flags: <defaults>
</compile_context>

<pallas_src>
import functools

import jax
import jax.numpy as jnp
from jax.experimental import pallas as pl
from jax.experimental.pallas import tpu as pltpu

ATTENTION_THRESHOLD = 0.1


def _round_up(x, m):
    return ((x + m - 1) // m) * m


def _roberta_gcn_kernel(hs_ref, mask_ref,
                        w1_ref, b1_ref, w2_ref, b2_ref, wc_ref, bc_ref,
                        out_ref):
    """One grid step == `Bb` graphs (batch elements)."""
    f32 = jnp.float32
    bf16 = jnp.bfloat16

    h = hs_ref[...]                                    # (Bb, S, Ep) bf16
    Bb, S, Ep = h.shape
    H1p = w1_ref.shape[1]
    H2p = w2_ref.shape[1]
    Cp = wc_ref.shape[1]

    # ---- attention scores: contract feature axes (no h.T materialized) ----
    scores = jnp.einsum('bse,bte->bst', h, h, preferred_element_type=f32)

    # ---- transposed row-softmax, computed column-wise -----------------------
    # scores = H @ H^T is symmetric (same K accumulation order for both
    # operands), so softmax_rows(scores)^T == column-softmax(scores).
    m_col = jnp.max(scores, axis=-2, keepdims=True)             # (Bb, 1, S)
    e = jnp.exp(scores - m_col)
    # exact reciprocal keeps the `att > 0.1` threshold decisions stable.
    att_t = e * pl.reciprocal(jnp.sum(e, axis=-2, keepdims=True))

    # ---- threshold + add_remaining_self_loops fused into one select --------
    # Identity built in-register (review item: no HBM eye input). The diagonal
    # fallback is symmetric, so it also serves the transposed adjacency.
    rows = jax.lax.broadcasted_iota(jnp.int32, (Bb, S, S), 1)
    cols = jax.lax.broadcasted_iota(jnp.int32, (Bb, S, S), 2)
    eye = jnp.where(rows == cols, 1.0, 0.0)                     # f32
    a_t = jnp.where(att_t > ATTENTION_THRESHOLD, att_t, eye)    # A^T

    # ---- symmetric gcn_norm, algebraically folded ---------------------------
    # deg[j] = column sums of A == row sums of A^T -> already a column vector.
    deg = jnp.sum(a_t, axis=-1, keepdims=True)                  # (Bb, S, 1)
    dinv = jnp.where(deg > 0.0, jax.lax.rsqrt(deg), 0.0)        # (Bb, S, 1)
    an_t = (dinv * a_t).astype(bf16)       # single S x S bf16 buffer, reused

    # ---- GCNConv 1: relu(Anorm^T @ (h @ W1) + b1) ---------------------------
    # Batched einsum against a broadcast weight: no reshape, no f32 temp.
    w1b = jnp.broadcast_to(w1_ref[...], (Bb, Ep, H1p))
    z1 = jnp.einsum('bse,bek->bsk', h, w1b, preferred_element_type=f32)
    z1 = (dinv * z1).astype(bf16)
    x1 = jnp.einsum('bji,bik->bjk', an_t, z1, preferred_element_type=f32)
    x1 = jnp.maximum(x1 + b1_ref[...], 0.0)
    # F.dropout(p=0.2, eval) -> identity; bn1 is nn.Identity().

    # ---- GCNConv 2 ----------------------------------------------------------
    w2b = jnp.broadcast_to(w2_ref[...], (Bb, H1p, H2p))
    z2 = jnp.einsum('bsh,bhk->bsk', x1.astype(bf16), w2b,
                    preferred_element_type=f32)
    z2 = (dinv * z2).astype(bf16)
    x2 = jnp.einsum('bji,bik->bjk', an_t, z2, preferred_element_type=f32)
    x2 = x2 + b2_ref[...]

    # ---- masked mean pooling BEFORE the classifier (exact by linearity) ----
    msk = mask_ref[...]                                          # (Bb, 1, S)
    denom = jnp.maximum(jnp.sum(msk, axis=-1, keepdims=True), 1.0)
    pooled = jnp.einsum('bos,bsh->boh', msk, x2, preferred_element_type=f32)
    pooled = pooled * pl.reciprocal(denom)                       # (Bb, 1, H2p)

    # ---- classifier on the pooled embedding (S-fold fewer MACs) ------------
    wcb = jnp.broadcast_to(wc_ref[...], (Bb, H2p, Cp))
    logits = jnp.einsum('boh,bhc->boc', pooled.astype(bf16), wcb,
                        preferred_element_type=f32) + bc_ref[...]
    out_ref[...] = jax.nn.sigmoid(logits)                        # (Bb, 1, Cp)


def prepare_params(params):
    """Pad/cast parameters ONCE (hoisted out of the jitted forward path)."""
    w1, b1, w2, b2, wc, bc = params
    E, H1 = w1.shape
    H2 = w2.shape[1]
    C = wc.shape[1]
    Ep, H1p, H2p, Cp = (_round_up(d, 128) for d in (E, H1, H2, C))
    return {
        'w1': jnp.pad(w1, ((0, Ep - E), (0, H1p - H1))).astype(jnp.bfloat16),
        'b1': jnp.pad(b1, (0, H1p - H1)).reshape(1, 1, H1p).astype(jnp.float32),
        'w2': jnp.pad(w2, ((0, H1p - H1), (0, H2p - H2))).astype(jnp.bfloat16),
        'b2': jnp.pad(b2, (0, H2p - H2)).reshape(1, 1, H2p).astype(jnp.float32),
        'wc': jnp.pad(wc, ((0, H2p - H2), (0, Cp - C))).astype(jnp.bfloat16),
        'bc': jnp.pad(bc, (0, Cp - C)).reshape(1, 1, Cp).astype(jnp.float32),
        'dims': (E, H1, H2, C),
        'padded': (Ep, H1p, H2p, Cp),
    }


def _pick_block_batch(batch, graphs_per_step, prefer_even_grid):
    bb = max(1, min(int(graphs_per_step), batch))
    while batch % bb:
        bb -= 1
    if prefer_even_grid and batch % 2 == 0:
        # keep the (parallel) grid a multiple of 2 so the v7x megacore splits
        # cleanly across both TensorCores.
        while bb > 1 and (batch // bb) % 2 != 0:
            bb -= 1
            while batch % bb:
                bb -= 1
    return bb


def roberta_gcn_forward(hidden_states, attention_mask, params, *,
                        graphs_per_step=None):
    """hidden_states: (B, S, E) float32 (RoBERTa last_hidden_state)
       attention_mask: (B, S) {0,1}
       params: output of `prepare_params` (already padded / bf16-cast)."""
    B, S, E = hidden_states.shape
    Ep, H1p, H2p, Cp = params['padded']
    C = params['dims'][3]

    kind = jax.devices()[0].device_kind.lower()
    is_v7 = ('v7' in kind) or ('7x' in kind)
    if graphs_per_step is None:
        # v7x: 64 MiB VMEM -> keep Bb=2; v5e/v6e: 128 MiB -> Bb=4.
        graphs_per_step = 2 if is_v7 else 4
    Bb = _pick_block_batch(B, graphs_per_step, prefer_even_grid=is_v7)

    # Lane-pad the feature dim (zero padding is exact) and cast once per call.
    hs = jnp.pad(hidden_states, ((0, 0), (0, 0), (0, Ep - E))).astype(jnp.bfloat16)
    mask3 = attention_mask.astype(jnp.float32).reshape(B, 1, S)

    # Right-sized VMEM budget (review item): derive from the live footprint,
    # cap at 40 MiB on v7x (64 MiB physical) / 64 MiB on v5e-v6e.
    f32b, bf16b = 4, 2
    vmem_est = (
        5 * Bb * S * S * f32b                               # f32 SxS temporaries
        + Bb * S * S * bf16b                                # an_t (bf16, reused)
        + 2 * 2 * Bb * S * Ep * bf16b                       # double-buffered hs
        + 3 * Bb * S * max(Ep, H1p, H2p) * f32b             # activations
        + 2 * 2 * (Ep * H1p + H1p * H2p + H2p * Cp) * bf16b # double-buffered weights
        + (4 << 20)                                         # compiler headroom
    )
    vmem_cap = (40 << 20) if is_v7 else (64 << 20)
    vmem_limit = int(min(max(vmem_est, 32 << 20), vmem_cap))

    out = pl.pallas_call(
        _roberta_gcn_kernel,
        out_shape=jax.ShapeDtypeStruct((B, 1, Cp), jnp.float32),
        grid=(B // Bb,),
        in_specs=[
            pl.BlockSpec((Bb, S, Ep), lambda i: (i, 0, 0)),   # hidden_states
            pl.BlockSpec((Bb, 1, S), lambda i: (i, 0, 0)),    # attention_mask
            pl.BlockSpec((Ep, H1p), lambda i: (0, 0)),        # gcn1 weight
            pl.BlockSpec((1, 1, H1p), lambda i: (0, 0, 0)),   # gcn1 bias
            pl.BlockSpec((H1p, H2p), lambda i: (0, 0)),       # gcn2 weight
            pl.BlockSpec((1, 1, H2p), lambda i: (0, 0, 0)),   # gcn2 bias
            pl.BlockSpec((H2p, Cp), lambda i: (0, 0)),        # classifier weight
            pl.BlockSpec((1, 1, Cp), lambda i: (0, 0, 0)),    # classifier bias
        ],
        out_specs=pl.BlockSpec((Bb, 1, Cp), lambda i: (i, 0, 0)),
        compiler_params=pltpu.CompilerParams(
            dimension_semantics=("parallel",),
            vmem_limit_bytes=vmem_limit),
    )(hs, mask3, params['w1'], params['b1'], params['w2'], params['b2'],
      params['wc'], params['bc'])
    return out.reshape(B, Cp)[:, :C]


def _reference_forward(hidden_states, attention_mask, params):
    """Pure-JAX reference mirroring the kernel's bf16/f32 mixed precision,
    folded gcn_norm, and pool-before-classifier ordering, so the comparison
    isolates kernel-lowering bugs."""
    w1, b1, w2, b2, wc, bc = params
    bf16, f32 = jnp.bfloat16, jnp.float32
    w1b, w2b, wcb = w1.astype(bf16), w2.astype(bf16), wc.astype(bf16)
    outs = []
    for i in range(hidden_states.shape[0]):
        h = hidden_states[i].astype(bf16)                          # (S, E)
        scores = jnp.dot(h, h.T, preferred_element_type=f32)
        m = scores.max(axis=-1, keepdims=True)
        e = jnp.exp(scores - m)
        att = e * (1.0 / e.sum(axis=-1, keepdims=True))
        A = jnp.where(att > ATTENTION_THRESHOLD, att,
                      jnp.eye(h.shape[0], dtype=f32))
        deg = A.sum(axis=0)
        dinv = jnp.where(deg > 0, jax.lax.rsqrt(deg), 0.0)
        dcol = dinv[:, None]
        an_t = (dcol * A.T).astype(bf16)
        z1 = jnp.dot(h, w1b, preferred_element_type=f32)
        x1 = jax.nn.relu(jnp.dot(an_t, (dcol * z1).astype(bf16),
                                 preferred_element_type=f32) + b1)
        z2 = jnp.dot(x1.astype(bf16), w2b, preferred_element_type=f32)
        x2 = jnp.dot(an_t, (dcol * z2).astype(bf16),
                     preferred_element_type=f32) + b2
        msk = attention_mask[i].astype(f32)
        pooled = (msk @ x2) * (1.0 / jnp.maximum(msk.sum(), 1.0))
        logits = jnp.dot(pooled.astype(bf16), wcb,
                         preferred_element_type=f32) + bc
        outs.append(jax.nn.sigmoid(logits))
    return jnp.stack(outs)


def init_params(key, embed_dim, hidden_dims, num_classes):
    k1, k2, k3 = jax.random.split(key, 3)
    w1 = (jax.random.normal(k1, (embed_dim, hidden_dims[0]), jnp.float32)
          * (1.0 / embed_dim) ** 0.5)
    b1 = jnp.zeros((hidden_dims[0],), jnp.float32)
    w2 = (jax.random.normal(k2, (hidden_dims[0], hidden_dims[1]), jnp.float32)
          * (1.0 / hidden_dims[0]) ** 0.5)
    b2 = jnp.zeros((hidden_dims[1],), jnp.float32)
    wc = (jax.random.normal(k3, (hidden_dims[1], num_classes), jnp.float32)
          * (1.0 / hidden_dims[1]) ** 0.5)
    bc = jnp.zeros((num_classes,), jnp.float32)
    return (w1, b1, w2, b2, wc, bc)


if __name__ == "__main__":
    # Small shapes consistent with the module structure.
    B, S, E = 4, 8, 32          # batch, seq_len, embed_dim
    HIDDEN = (16, 8)            # hidden_dims
    C = 1                       # num_classes

    key = jax.random.PRNGKey(0)
    k_hs, k_p = jax.random.split(key)
    hidden_states = jax.random.normal(k_hs, (B, S, E), jnp.float32)
    # attention_mask: first `n` tokens valid per example.
    attention_mask = jnp.stack(
        [(jnp.arange(S) < n).astype(jnp.int32) for n in (8, 5, 7, 3)])
    raw_params = init_params(k_p, E, HIDDEN, C)
    prepared = prepare_params(raw_params)    # pad/cast hoisted out of jit

    fwd = jax.jit(functools.partial(roberta_gcn_forward, params=prepared))
    probs = jax.block_until_ready(fwd(hidden_states, attention_mask))

    ref = _reference_forward(hidden_states, attention_mask, raw_params)
    assert probs.shape == (B, C)
    assert jnp.allclose(probs, ref, atol=2e-3, rtol=2e-3), (probs, ref)
    print("KERNEL_OK")
</pallas_src>

<mosaic_0001>
module attributes {stable_mosaic.version = 11 : i64} {
  func.func @_roberta_gcn_kernel(%arg0: i32, %arg1: memref<4x8x128xbf16, #tpu.memory_space<vmem>>, %arg2: memref<4x1x8xf32, #tpu.memory_space<vmem>>, %arg3: memref<128x128xbf16, #tpu.memory_space<vmem>>, %arg4: memref<1x1x128xf32, #tpu.memory_space<vmem>>, %arg5: memref<128x128xbf16, #tpu.memory_space<vmem>>, %arg6: memref<1x1x128xf32, #tpu.memory_space<vmem>>, %arg7: memref<128x128xbf16, #tpu.memory_space<vmem>>, %arg8: memref<1x1x128xf32, #tpu.memory_space<vmem>>, %arg9: memref<4x1x128xf32, #tpu.memory_space<vmem>>) attributes {dimension_semantics = [#tpu.dimension_semantics<parallel>], iteration_bounds = array<i64: 1>, scalar_prefetch = 0 : i64, scratch_operands = 0 : i64, tpu.core_type = #tpu.core_type<tc>, window_params = [{transform_indices = @transform_0, window_bounds = array<i64: 4, 8, 128>}, {transform_indices = @transform_1, window_bounds = array<i64: 4, 1, 8>}, {pipeline_mode = #tpu.pipeline_mode<synchronous>, transform_indices = @transform_2, window_bounds = array<i64: 128, 128>}, {pipeline_mode = #tpu.pipeline_mode<synchronous>, transform_indices = @transform_3, window_bounds = array<i64: 1, 1, 128>}, {pipeline_mode = #tpu.pipeline_mode<synchronous>, transform_indices = @transform_4, window_bounds = array<i64: 128, 128>}, {pipeline_mode = #tpu.pipeline_mode<synchronous>, transform_indices = @transform_5, window_bounds = array<i64: 1, 1, 128>}, {pipeline_mode = #tpu.pipeline_mode<synchronous>, transform_indices = @transform_6, window_bounds = array<i64: 128, 128>}, {pipeline_mode = #tpu.pipeline_mode<synchronous>, transform_indices = @transform_7, window_bounds = array<i64: 1, 1, 128>}, {transform_indices = @transform_8, window_bounds = array<i64: 4, 1, 128>}]} {
    %c0 = arith.constant 0 : index
    %c0_0 = arith.constant 0 : index
    %c0_1 = arith.constant 0 : index
    %0 = vector.load %arg1[%c0, %c0_0, %c0_1] : memref<4x8x128xbf16, #tpu.memory_space<vmem>>, vector<4x8x128xbf16>
    "tpu.trace_start"() <{level = 10 : i32, message = "bse,bte->bst"}> : () -> ()
    %cst = arith.constant dense<0.000000e+00> : vector<4x8x8xf32>
    %1 = tpu.matmul %0, %0, %cst {dimension_numbers = #tpu.dot_dimension_numbers<[2], [2], [1], [1], [0, 0, 0, 1, 1, 1], [0], [0]>} : vector<4x8x128xbf16>, vector<4x8x128xbf16>, vector<4x8x8xf32> -> vector<4x8x8xf32>
    "tpu.trace_stop"() : () -> ()
    %cst_2 = arith.constant dense<0xFF800000> : vector<4x8xf32>
    %2 = vector.multi_reduction <maximumf>, %1, %cst_2 [1] : vector<4x8x8xf32> to vector<4x8xf32>
    %3 = vector.shape_cast %2 : vector<4x8xf32> to vector<4x1x8xf32>
    %4 = vector.broadcast %3 : vector<4x1x8xf32> to vector<4x8x8xf32>
    %5 = arith.subf %1, %4 : vector<4x8x8xf32>
    %6 = math.exp %5 : vector<4x8x8xf32>
    %cst_3 = arith.constant dense<0.000000e+00> : vector<4x8xf32>
    %7 = vector.multi_reduction <add>, %6, %cst_3 [1] : vector<4x8x8xf32> to vector<4x8xf32>
    %8 = vector.shape_cast %7 : vector<4x8xf32> to vector<4x1x8xf32>
    %9 = tpu.reciprocal %8 : vector<4x1x8xf32> -> vector<4x1x8xf32>
    %10 = vector.broadcast %9 : vector<4x1x8xf32> to vector<4x8x8xf32>
    %11 = arith.mulf %6, %10 : vector<4x8x8xf32>
    %12 = tpu.iota {dimensions = array<i32: 1>} : vector<4x8x8xi32>
    %13 = tpu.iota {dimensions = array<i32: 2>} : vector<4x8x8xi32>
    %14 = arith.cmpi eq, %12, %13 : vector<4x8x8xi32>
    %cst_4 = arith.constant 1.000000e+00 : f32
    %cst_5 = arith.constant 0.000000e+00 : f32
    %15 = vector.broadcast %cst_4 : f32 to vector<4x8x8xf32>
    %16 = vector.broadcast %cst_5 : f32 to vector<4x8x8xf32>
    %17 = arith.select %14, %15, %16 : vector<4x8x8xi1>, vector<4x8x8xf32>
    %cst_6 = arith.constant 1.000000e-01 : f32
    %18 = vector.broadcast %cst_6 : f32 to vector<4x8x8xf32>
    %19 = arith.cmpf ogt, %11, %18 : vector<4x8x8xf32>
    %20 = arith.select %19, %11, %17 : vector<4x8x8xi1>, vector<4x8x8xf32>
    %cst_7 = arith.constant dense<0.000000e+00> : vector<4x8xf32>
    %21 = vector.multi_reduction <add>, %20, %cst_7 [2] : vector<4x8x8xf32> to vector<4x8xf32>
    %22 = vector.shape_cast %21 : vector<4x8xf32> to vector<4x8x1xf32>
    %cst_8 = arith.constant 0.000000e+00 : f32
    %23 = vector.broadcast %cst_8 : f32 to vector<4x8x1xf32>
    %24 = arith.cmpf ogt, %22, %23 : vector<4x8x1xf32>
    %25 = math.rsqrt %22 : vector<4x8x1xf32>
    %cst_9 = arith.constant 0.000000e+00 : f32
    %26 = vector.broadcast %cst_9 : f32 to vector<4x8x1xf32>
    %27 = arith.select %24, %25, %26 : vector<4x8x1xi1>, vector<4x8x1xf32>
    %28 = vector.broadcast %27 : vector<4x8x1xf32> to vector<4x8x8xf32>
    %29 = arith.mulf %28, %20 : vector<4x8x8xf32>
    %30 = arith.truncf %29 : vector<4x8x8xf32> to vector<4x8x8xbf16>
    %c0_10 = arith.constant 0 : index
    %c0_11 = arith.constant 0 : index
    %31 = vector.load %arg3[%c0_10, %c0_11] : memref<128x128xbf16, #tpu.memory_space<vmem>>, vector<128x128xbf16>
    %32 = vector.shape_cast %31 : vector<128x128xbf16> to vector<1x128x128xbf16>
    %33 = vector.broadcast %32 : vector<1x128x128xbf16> to vector<4x128x128xbf16>
    "tpu.trace_start"() <{level = 10 : i32, message = "bse,bek->bsk"}> : () -> ()
    %cst_12 = arith.constant dense<0.000000e+00> : vector<4x8x128xf32>
    %34 = tpu.matmul %0, %33, %cst_12 {dimension_numbers = #tpu.dot_dimension_numbers<[2], [1], [1], [2], [0, 0, 0, 1, 1, 2], [0], [0]>} : vector<4x8x128xbf16>, vector<4x128x128xbf16>, vector<4x8x128xf32> -> vector<4x8x128xf32>
    "tpu.trace_stop"() : () -> ()
    %35 = vector.broadcast %27 : vector<4x8x1xf32> to vector<4x8x128xf32>
    %36 = arith.mulf %35, %34 : vector<4x8x128xf32>
    %37 = arith.truncf %36 : vector<4x8x128xf32> to vector<4x8x128xbf16>
    "tpu.trace_start"() <{level = 10 : i32, message = "bji,bik->bjk"}> : () -> ()
    %cst_13 = arith.constant dense<0.000000e+00> : vector<4x8x128xf32>
    %38 = tpu.matmul %30, %37, %cst_13 {dimension_numbers = #tpu.dot_dimension_numbers<[2], [1], [1], [2], [0, 0, 0, 1, 1, 2], [0], [0]>} : vector<4x8x8xbf16>, vector<4x8x128xbf16>, vector<4x8x128xf32> -> vector<4x8x128xf32>
    "tpu.trace_stop"() : () -> ()
    %c0_14 = arith.constant 0 : index
    %c0_15 = arith.constant 0 : index
    %c0_16 = arith.constant 0 : index
    %39 = vector.load %arg4[%c0_14, %c0_15, %c0_16] : memref<1x1x128xf32, #tpu.memory_space<vmem>>, vector<1x1x128xf32>
    %40 = vector.broadcast %39 : vector<1x1x128xf32> to vector<4x8x128xf32>
    %41 = arith.addf %38, %40 : vector<4x8x128xf32>
    %cst_17 = arith.constant 0.000000e+00 : f32
    %42 = vector.broadcast %cst_17 : f32 to vector<4x8x128xf32>
    %43 = arith.maximumf %41, %42 : vector<4x8x128xf32>
    %c0_18 = arith.constant 0 : index
    %c0_19 = arith.constant 0 : index
    %44 = vector.load %arg5[%c0_18, %c0_19] : memref<128x128xbf16, #tpu.memory_space<vmem>>, vector<128x128xbf16>
    %45 = vector.shape_cast %44 : vector<128x128xbf16> to vector<1x128x128xbf16>
    %46 = vector.broadcast %45 : vector<1x128x128xbf16> to vector<4x128x128xbf16>
    %47 = arith.truncf %43 : vector<4x8x128xf32> to vector<4x8x128xbf16>
    "tpu.trace_start"() <{level = 10 : i32, message = "bsh,bhk->bsk"}> : () -> ()
    %cst_20 = arith.constant dense<0.000000e+00> : vector<4x8x128xf32>
    %48 = tpu.matmul %47, %46, %cst_20 {dimension_numbers = #tpu.dot_dimension_numbers<[2], [1], [1], [2], [0, 0, 0, 1, 1, 2], [0], [0]>} : vector<4x8x128xbf16>, vector<4x128x128xbf16>, vector<4x8x128xf32> -> vector<4x8x128xf32>
    "tpu.trace_stop"() : () -> ()
    %49 = vector.broadcast %27 : vector<4x8x1xf32> to vector<4x8x128xf32>
    %50 = arith.mulf %49, %48 : vector<4x8x128xf32>
    %51 = arith.truncf %50 : vector<4x8x128xf32> to vector<4x8x128xbf16>
    "tpu.trace_start"() <{level = 10 : i32, message = "bji,bik->bjk"}> : () -> ()
    %cst_21 = arith.constant dense<0.000000e+00> : vector<4x8x128xf32>
    %52 = tpu.matmul %30, %51, %cst_21 {dimension_numbers = #tpu.dot_dimension_numbers<[2], [1], [1], [2], [0, 0, 0, 1, 1, 2], [0], [0]>} : vector<4x8x8xbf16>, vector<4x8x128xbf16>, vector<4x8x128xf32> -> vector<4x8x128xf32>
    "tpu.trace_stop"() : () -> ()
    %c0_22 = arith.constant 0 : index
    %c0_23 = arith.constant 0 : index
    %c0_24 = arith.constant 0 : index
    %53 = vector.load %arg6[%c0_22, %c0_23, %c0_24] : memref<1x1x128xf32, #tpu.memory_space<vmem>>, vector<1x1x128xf32>
    %54 = vector.broadcast %53 : vector<1x1x128xf32> to vector<4x8x128xf32>
    %55 = arith.addf %52, %54 : vector<4x8x128xf32>
    %c0_25 = arith.constant 0 : index
    %c0_26 = arith.constant 0 : index
    %c0_27 = arith.constant 0 : index
    %56 = vector.load %arg2[%c0_25, %c0_26, %c0_27] : memref<4x1x8xf32, #tpu.memory_space<vmem>>, vector<4x1x8xf32>
    %cst_28 = arith.constant dense<0.000000e+00> : vector<4x1xf32>
    %57 = vector.multi_reduction <add>, %56, %cst_28 [2] : vector<4x1x8xf32> to vector<4x1xf32>
    %58 = vector.shape_cast %57 : vector<4x1xf32> to vector<4x1x1xf32>
    %cst_29 = arith.constant 1.000000e+00 : f32
    %59 = vector.broadcast %cst_29 : f32 to vector<4x1x1xf32>
    %60 = arith.maximumf %58, %59 : vector<4x1x1xf32>
    "tpu.trace_start"() <{level = 10 : i32, message = "bos,bsh->boh"}> : () -> ()
    %cst_30 = arith.constant dense<0.000000e+00> : vector<4x1x128xf32>
    %61 = tpu.matmul %56, %55, %cst_30 {dimension_numbers = #tpu.dot_dimension_numbers<[2], [1], [1], [2], [0, 0, 0, 1, 1, 2], [0], [0]>} : vector<4x1x8xf32>, vector<4x8x128xf32>, vector<4x1x128xf32> -> vector<4x1x128xf32>
    "tpu.trace_stop"() : () -> ()
    %62 = tpu.reciprocal %60 : vector<4x1x1xf32> -> vector<4x1x1xf32>
    %63 = vector.broadcast %62 : vector<4x1x1xf32> to vector<4x1x128xf32>
    %64 = arith.mulf %61, %63 : vector<4x1x128xf32>
    %c0_31 = arith.constant 0 : index
    %c0_32 = arith.constant 0 : index
    %65 = vector.load %arg7[%c0_31, %c0_32] : memref<128x128xbf16, #tpu.memory_space<vmem>>, vector<128x128xbf16>
    %66 = vector.shape_cast %65 : vector<128x128xbf16> to vector<1x128x128xbf16>
    %67 = vector.broadcast %66 : vector<1x128x128xbf16> to vector<4x128x128xbf16>
    %68 = arith.truncf %64 : vector<4x1x128xf32> to vector<4x1x128xbf16>
    "tpu.trace_start"() <{level = 10 : i32, message = "boh,bhc->boc"}> : () -> ()
    %cst_33 = arith.constant dense<0.000000e+00> : vector<4x1x128xf32>
    %69 = tpu.matmul %68, %67, %cst_33 {dimension_numbers = #tpu.dot_dimension_numbers<[2], [1], [1], [2], [0, 0, 0, 1, 1, 2], [0], [0]>} : vector<4x1x128xbf16>, vector<4x128x128xbf16>, vector<4x1x128xf32> -> vector<4x1x128xf32>
    "tpu.trace_stop"() : () -> ()
    %c0_34 = arith.constant 0 : index
    %c0_35 = arith.constant 0 : index
    %c0_36 = arith.constant 0 : index
    %70 = vector.load %arg8[%c0_34, %c0_35, %c0_36] : memref<1x1x128xf32, #tpu.memory_space<vmem>>, vector<1x1x128xf32>
    %71 = vector.broadcast %70 : vector<1x1x128xf32> to vector<4x1x128xf32>
    %72 = arith.addf %69, %71 : vector<4x1x128xf32>
    %73 = arith.negf %72 : vector<4x1x128xf32>
    %74 = math.exp %73 : vector<4x1x128xf32>
    %cst_37 = arith.constant 1.000000e+00 : f32
    %75 = vector.broadcast %cst_37 : f32 to vector<4x1x128xf32>
    %76 = arith.addf %75, %74 : vector<4x1x128xf32>
    %77 = arith.divf %75, %76 : vector<4x1x128xf32>
    %c0_38 = arith.constant 0 : index
    %c0_39 = arith.constant 0 : index
    %c0_40 = arith.constant 0 : index
    %78 = vector.load %arg9[%c0_38, %c0_39, %c0_40] : memref<4x1x128xf32, #tpu.memory_space<vmem>>, vector<4x1x128xf32>
    tpu.vector_store %arg9[%c0_38, %c0_39, %c0_40], %77 {strides = array<i32>} : memref<4x1x128xf32, #tpu.memory_space<vmem>>, vector<4x1x128xf32>,
    return
  }
  func.func @transform_0(%arg0: i32) -> (i32, i32, i32) {
    %c0_i32 = arith.constant 0 : i32
    %c0_i32_0 = arith.constant 0 : i32
    %c0_i32_1 = arith.constant 0 : i32
    return %arg0, %c0_i32, %c0_i32_0 : i32, i32, i32
  }
  func.func @transform_1(%arg0: i32) -> (i32, i32, i32) {
    %c0_i32 = arith.constant 0 : i32
    %c0_i32_0 = arith.constant 0 : i32
    %c0_i32_1 = arith.constant 0 : i32
    return %arg0, %c0_i32, %c0_i32_0 : i32, i32, i32
  }
  func.func @transform_2(%arg0: i32) -> (i32, i32) {
    %c0_i32 = arith.constant 0 : i32
    %c0_i32_0 = arith.constant 0 : i32
    %c0_i32_1 = arith.constant 0 : i32
    return %c0_i32, %c0_i32_0 : i32, i32
  }
  func.func @transform_3(%arg0: i32) -> (i32, i32, i32) {
    %c0_i32 = arith.constant 0 : i32
    %c0_i32_0 = arith.constant 0 : i32
    %c0_i32_1 = arith.constant 0 : i32
    %c0_i32_2 = arith.constant 0 : i32
    return %c0_i32, %c0_i32_0, %c0_i32_1 : i32, i32, i32
  }
  func.func @transform_4(%arg0: i32) -> (i32, i32) {
    %c0_i32 = arith.constant 0 : i32
    %c0_i32_0 = arith.constant 0 : i32
    %c0_i32_1 = arith.constant 0 : i32
    return %c0_i32, %c0_i32_0 : i32, i32
  }
  func.func @transform_5(%arg0: i32) -> (i32, i32, i32) {
    %c0_i32 = arith.constant 0 : i32
    %c0_i32_0 = arith.constant 0 : i32
    %c0_i32_1 = arith.constant 0 : i32
    %c0_i32_2 = arith.constant 0 : i32
    return %c0_i32, %c0_i32_0, %c0_i32_1 : i32, i32, i32
  }
  func.func @transform_6(%arg0: i32) -> (i32, i32) {
    %c0_i32 = arith.constant 0 : i32
    %c0_i32_0 = arith.constant 0 : i32
    %c0_i32_1 = arith.constant 0 : i32
    return %c0_i32, %c0_i32_0 : i32, i32
  }
  func.func @transform_7(%arg0: i32) -> (i32, i32, i32) {
    %c0_i32 = arith.constant 0 : i32
    %c0_i32_0 = arith.constant 0 : i32
    %c0_i32_1 = arith.constant 0 : i32
    %c0_i32_2 = arith.constant 0 : i32
    return %c0_i32, %c0_i32_0, %c0_i32_1 : i32, i32, i32
  }
  func.func @transform_8(%arg0: i32) -> (i32, i32, i32) {
    %c0_i32 = arith.constant 0 : i32
    %c0_i32_0 = arith.constant 0 : i32
    %c0_i32_1 = arith.constant 0 : i32
    return %arg0, %c0_i32, %c0_i32_0 : i32, i32, i32
  }
}

</mosaic_0001>

<llo_original>
// kernel: roberta_gcn_forward.1
$region0: #{roberta_gcn_forward.1}
  #allocation0 [shape = 'u32[]', space=smem, size = 0x4, offset = 0x4, fixed_abs, tag = 'smem constant byte address 0x4 - core index']
  #allocation1 [shape = 'u32[72,128]{1,0:T(1,128)}', space=vmem, size = 0x9000, scoped, tag = 'internal scratch']
  %s0 = inlined_call_operand.vmem [shape: bf16[4,8,128], index: 0, kind: input, shape index: {}]
  %s1 = inlined_call_operand.vmem [shape: f32[4,1,8], index: 1, kind: input, shape index: {}]
  %s2 = inlined_call_operand.vmem [shape: bf16[128,128], index: 2, kind: input, shape index: {}]
  %s3 = inlined_call_operand.vmem [shape: f32[1,1,128], index: 3, kind: input, shape index: {}, may-alias: {3,5,7}]
  %s4 = inlined_call_operand.hbm [shape: bf16[128,128], index: 4, kind: input, shape index: {}]
  %s5 = inlined_call_operand.vmem [shape: f32[1,1,128], index: 5, kind: input, shape index: {}, may-alias: {3,5,7}]
  %s6 = inlined_call_operand.hbm [shape: bf16[128,128], index: 6, kind: input, shape index: {}]
  %s7 = inlined_call_operand.vmem [shape: f32[1,1,128], index: 7, kind: input, shape index: {}, may-alias: {3,5,7}]
  %s8 = inlined_call_operand.vmem [shape: f32[4,1,128], index: 8, kind: output, shape index: {}]
  %s9 = sld [smem:[#allocation0]]
  $region50: #{roberta_gcn_forward.1} parent=0
    _
  %s11 = ssub.s32 1, %s9
  %s12 = scalar_select 0, %s11, %s9
  $region1: #{roberta_gcn_forward.1} parent=0
    #allocation2 [shape = 'u8[32768]{0}', space=vmem, size = 0x8000, scoped, tag = 'input window, operand 4, single buffered']
    #allocation3 [shape = 's32[1]{0}', space=sflag, size = 0x4, scoped, tag = 'scoped memory for roberta_gcn_forward.1']
    #allocation4 [shape = 'u8[32768]{0}', space=vmem, size = 0x8000, scoped, tag = 'input window, operand 6, single buffered']
    #allocation5 [shape = 's32[1]{0}', space=sflag, size = 0x4, scoped, tag = 'scoped memory for roberta_gcn_forward.1']
    %13 = vsyncpa [#allocation3], 0
    %14 = vsyncpa [#allocation5], 0
    // Predicated region
    $region2: #{roberta_gcn_forward.1} parent=1 // pred_check
      _
    $region3: #{roberta_gcn_forward.1} parent=1 // pred_check_branch
      %16 = sbr.rel (0) target = $region5
    $region4: #{roberta_gcn_forward.1} parent=1 // pred_region
      _
    $region5: #{roberta_gcn_forward.1} parent=1 // pred_fallthru
      _
    // Predicated region
    $region6: #{roberta_gcn_forward.1} parent=1 // pred_check
      _
    $region7: #{roberta_gcn_forward.1} parent=1 // pred_check_branch
      %18 = sbr.rel (0) target = $region9
    $region8: #{roberta_gcn_forward.1} parent=1 // pred_region
      _
    $region9: #{roberta_gcn_forward.1} parent=1 // pred_fallthru
      _
    // Predicated region
    $region10: #{roberta_gcn_forward.1} parent=1 // pred_check
      _
    $region11: #{roberta_gcn_forward.1} parent=1 // pred_check_branch
      %20 = sbr.rel (0) target = $region13
    $region12: #{roberta_gcn_forward.1} parent=1 // pred_region
      _
    $region13: #{roberta_gcn_forward.1} parent=1 // pred_fallthru
      _
    // Predicated region
    $region14: #{roberta_gcn_forward.1} parent=1 // pred_check
      _
    $region15: #{roberta_gcn_forward.1} parent=1 // pred_check_branch
      %22 = sbr.rel (0) target = $region17
    $region16: #{roberta_gcn_forward.1} parent=1 // pred_region
      _
    $region17: #{roberta_gcn_forward.1} parent=1 // pred_fallthru
      _
    // Predicated region
    $region18: #{roberta_gcn_forward.1} parent=1 // pred_check
      _
    $region19: #{roberta_gcn_forward.1} parent=1 // pred_check_branch
      %24 = sbr.rel (0) target = $region21
    $region20: #{roberta_gcn_forward.1} parent=1 // pred_region
      %26 = vsyncadd [#allocation3], 0
      %s27 = sshll.u32 %s4, 4
      %s28 = int_to_ptr.hbm [resolvable:$true] %s27
      %s29 = sshll.u32 [#allocation2], 4
      %s30 = int_to_ptr.vmem [resolvable:$true] %s29
      %35 = dma.hbm_to_vmem [thread:$0]  %s28, 1024, %s30, [#allocation3], 64, 64, 4
    $region21: #{roberta_gcn_forward.1} parent=1 // pred_fallthru
      _
    // Predicated region
    $region22: #{roberta_gcn_forward.1} parent=1 // pred_check
      _
    $region23: #{roberta_gcn_forward.1} parent=1 // pred_check_branch
      %37 = sbr.rel (0) target = $region25
    $region24: #{roberta_gcn_forward.1} parent=1 // pred_region
      _
    $region25: #{roberta_gcn_forward.1} parent=1 // pred_fallthru
      _
    // Predicated region
    $region26: #{roberta_gcn_forward.1} parent=1 // pred_check
      _
    $region27: #{roberta_gcn_forward.1} parent=1 // pred_check_branch
      %39 = sbr.rel (0) target = $region29
    $region28: #{roberta_gcn_forward.1} parent=1 // pred_region
      %41 = vsyncadd [#allocation5], 0
      %s42 = sshll.u32 %s6, 4
      %s43 = int_to_ptr.hbm [resolvable:$true] %s42
      %s44 = sshll.u32 [#allocation4], 4
      %s45 = int_to_ptr.vmem [resolvable:$true] %s44
      %50 = dma.hbm_to_vmem [thread:$0]  %s43, 1024, %s45, [#allocation5], 64, 64, 4
    $region29: #{roberta_gcn_forward.1} parent=1 // pred_fallthru
      _
    // Predicated region
    $region30: #{roberta_gcn_forward.1} parent=1 // pred_check
      _
    $region31: #{roberta_gcn_forward.1} parent=1 // pred_check_branch
      %52 = sbr.rel (0) target = $region33
    $region32: #{roberta_gcn_forward.1} parent=1 // pred_region
      _
    $region33: #{roberta_gcn_forward.1} parent=1 // pred_fallthru
      _
    // Predicated region
    $region34: #{roberta_gcn_forward.1} parent=1 // pred_check
      _
    $region35: #{roberta_gcn_forward.1} parent=1 // pred_check_branch
      %54 = sbr.rel (0) target = $region37
    $region36: #{roberta_gcn_forward.1} parent=1 // pred_region
      %56 = dma.done [#allocation3], 1024
    $region37: #{roberta_gcn_forward.1} parent=1 // pred_fallthru
      _
    // Predicated region
    $region38: #{roberta_gcn_forward.1} parent=1 // pred_check
      _
    $region39: #{roberta_gcn_forward.1} parent=1 // pred_check_branch
      %58 = sbr.rel (0) target = $region41
    $region40: #{roberta_gcn_forward.1} parent=1 // pred_region
      %60 = dma.done [#allocation5], 1024
    $region41: #{roberta_gcn_forward.1} parent=1 // pred_fallthru
      _
    %v62 = vld [vmem:[%s0] sm:$0xf]
    %v63 = vld [vmem:[%s0 + $0x4] sm:$0xf]
    %v64 = vld [vmem:[%s0 + $0x8] sm:$0xf]
    %v65 = vld [vmem:[%s0 + $0xc] sm:$0xf]
    %66 = vmatpush.bf16.xpose.msra.mxu0 0
    %67 = vmatpush.bf16.xpose.msra.mxu0 0
    %68 = vmatpush.bf16.xpose.msra.mxu0 0
    %69 = vmatpush.bf16.xpose.msra.mxu0 0
    %70 = vmatpush.bf16.xpose.msra.mxu0 0
    %71 = vmatpush.bf16.xpose.msra.mxu0 0
    %72 = vmatpush.bf16.xpose.msra.mxu0 0
    %73 = vmatpush.bf16.xpose.msra.mxu0 %v62
    %74 = vmatmul.bf16.gmra.mxu0 %v62
    %v75 = vpop.f32.mrf.mxu0
    %v76 = vadd.f32 0.0, %v75
    %v77 = vpop.f32.mrf.mxu0
    %78 = vdwg.mxu0
    %79 = vmatpush.bf16.xpose.msra.mxu0 0
    %80 = vmatpush.bf16.xpose.msra.mxu0 0
    %81 = vmatpush.bf16.xpose.msra.mxu0 0
    %82 = vmatpush.bf16.xpose.msra.mxu0 0
    %83 = vmatpush.bf16.xpose.msra.mxu0 0
    %84 = vmatpush.bf16.xpose.msra.mxu0 0
    %85 = vmatpush.bf16.xpose.msra.mxu0 0
    %86 = vmatpush.bf16.xpose.msra.mxu0 %v63
    %87 = vmatmul.bf16.gmra.mxu0 %v63
    %v88 = vpop.f32.mrf.mxu0
    %v89 = vadd.f32 0.0, %v88
    %v90 = vpop.f32.mrf.mxu0
    %91 = vdwg.mxu0
    %92 = vmatpush.bf16.xpose.msra.mxu0 0
    %93 = vmatpush.bf16.xpose.msra.mxu0 0
    %94 = vmatpush.bf16.xpose.msra.mxu0 0
    %95 = vmatpush.bf16.xpose.msra.mxu0 0
    %96 = vmatpush.bf16.xpose.msra.mxu0 0
    %97 = vmatpush.bf16.xpose.msra.mxu0 0
    %98 = vmatpush.bf16.xpose.msra.mxu0 0
    %99 = vmatpush.bf16.xpose.msra.mxu0 %v64
    %100 = vmatmul.bf16.gmra.mxu0 %v64
    %v101 = vpop.f32.mrf.mxu0
    %v102 = vadd.f32 0.0, %v101
    %v103 = vpop.f32.mrf.mxu0
    %104 = vdwg.mxu0
    %105 = vmatpush.bf16.xpose.msra.mxu0 0
    %106 = vmatpush.bf16.xpose.msra.mxu0 0
    %107 = vmatpush.bf16.xpose.msra.mxu0 0
    %108 = vmatpush.bf16.xpose.msra.mxu0 0
    %109 = vmatpush.bf16.xpose.msra.mxu0 0
    %110 = vmatpush.bf16.xpose.msra.mxu0 0
    %111 = vmatpush.bf16.xpose.msra.mxu0 0
    %112 = vmatpush.bf16.xpose.msra.mxu0 %v65
    %113 = vmatmul.bf16.gmra.mxu0 %v65
    %v114 = vpop.f32.mrf.mxu0
    %v115 = vadd.f32 0.0, %v114
    %v116 = vpop.f32.mrf.mxu0
    %117 = vdwg.mxu0
    %vm118 = vcmask 64512
    %v119 = vsel %vm118, %v76, -inf
    %v120 = vrot.slane %v119, 4
    %v121 = vmax.f32 %v119, %v120
    %v122 = vrot.slane %v121, 2
    %v123 = vmax.f32 %v121, %v122
    %v124 = vrot.slane %v123, 1
    %v125 = vmax.f32 %v123, %v124
    %v126 = vsel %vm118, %v89, -inf
    %v127 = vrot.slane %v126, 4
    %v128 = vmax.f32 %v126, %v127
    %v129 = vrot.slane %v128, 2
    %v130 = vmax.f32 %v128, %v129
    %v131 = vrot.slane %v130, 1
    %v132 = vmax.f32 %v130, %v131
    %v133 = vsel %vm118, %v102, -inf
    %v134 = vrot.slane %v133, 4
    %v135 = vmax.f32 %v133, %v134
    %v136 = vrot.slane %v135, 2
    %v137 = vmax.f32 %v135, %v136
    %v138 = vrot.slane %v137, 1
    %v139 = vmax.f32 %v137, %v138
    %v140 = vsel %vm118, %v115, -inf
    %v141 = vrot.slane %v140, 4
    %v142 = vmax.f32 %v140, %v141
    %v143 = vrot.slane %v142, 2
    %v144 = vmax.f32 %v142, %v143
    %v145 = vrot.slane %v144, 1
    %v146 = vmax.f32 %v144, %v145
    %v147 = vsub.f32 %v76, %v125
    %v148 = vsub.f32 %v89, %v132
    %v149 = vsub.f32 %v102, %v139
    %v150 = vsub.f32 %v115, %v146
    %v151 = vmul.f32 %v147, 1.442695
    %v152 = vpow.pop %v151
    %v153 = vmul.f32 %v148, 1.442695
    %v154 = vpow.pop %v153
    %v155 = vmul.f32 %v149, 1.442695
    %v156 = vpow.pop %v155
    %v157 = vmul.f32 %v150, 1.442695
    %v158 = vpow.pop %v157
    %v159 = vsel %vm118, %v152, 0.0
    %v160 = vrot.slane %v159, 4
    %v161 = vadd.f32 %v159, %v160
    %v162 = vrot.slane %v161, 2
    %v163 = vadd.f32 %v161, %v162
    %v164 = vrot.slane %v163, 1
    %v165 = vadd.f32 %v163, %v164
    %v166 = vsel %vm118, %v154, 0.0
    %v167 = vrot.slane %v166, 4
    %v168 = vadd.f32 %v166, %v167
    %v169 = vrot.slane %v168, 2
    %v170 = vadd.f32 %v168, %v169
    %v171 = vrot.slane %v170, 1
    %v172 = vadd.f32 %v170, %v171
    %v173 = vsel %vm118, %v156, 0.0
    %v174 = vrot.slane %v173, 4
    %v175 = vadd.f32 %v173, %v174
    %v176 = vrot.slane %v175, 2
    %v177 = vadd.f32 %v175, %v176
    %v178 = vrot.slane %v177, 1
    %v179 = vadd.f32 %v177, %v178
    %v180 = vsel %vm118, %v158, 0.0
    %v181 = vrot.slane %v180, 4
    %v182 = vadd.f32 %v180, %v181
    %v183 = vrot.slane %v182, 2
    %v184 = vadd.f32 %v182, %v183
    %v185 = vrot.slane %v184, 1
    %v186 = vadd.f32 %v184, %v185
    %v187 = vrcp.pop %v165
    %v188 = vmul.f32 %v165, %v187
    %v189 = vsub.f32 1.0, %v188
    %v190 = vmul.f32 %v187, %v189
    %v191 = vadd.f32 %v187, %v190
    %vm192 = vweird.f32 %v165
    %vm193 = vweird.f32 %v187
    %vm194 = vmor %vm192, %vm193
    %v195 = vsel %vm194, %v187, %v191
    %v196 = vand.u32 2147483647, %v165
    %vm197 = vcmp.eq.f32.partialorder %v196, 8.507059e+37
    %v198 = vand.u32 %v165, 2147483648
    %v199 = vor.u32 1.1754944e-38, %v198
    %v200 = vsel %vm197, %v199, %v195
    %v201 = vrcp.pop %v172
    %v202 = vmul.f32 %v172, %v201
    %v203 = vsub.f32 1.0, %v202
    %v204 = vmul.f32 %v201, %v203
    %v205 = vadd.f32 %v201, %v204
    %vm206 = vweird.f32 %v172
    %vm207 = vweird.f32 %v201
    %vm208 = vmor %vm206, %vm207
    %v209 = vsel %vm208, %v201, %v205
    %v210 = vand.u32 2147483647, %v172
    %vm211 = vcmp.eq.f32.partialorder %v210, 8.507059e+37
    %v212 = vand.u32 %v172, 2147483648
    %v213 = vor.u32 1.1754944e-38, %v212
    %v214 = vsel %vm211, %v213, %v209
    %v215 = vrcp.pop %v179
    %v216 = vmul.f32 %v179, %v215
    %v217 = vsub.f32 1.0, %v216
    %v218 = vmul.f32 %v215, %v217
    %v219 = vadd.f32 %v215, %v218
    %vm220 = vweird.f32 %v179
    %vm221 = vweird.f32 %v215
    %vm222 = vmor %vm220, %vm221
    %v223 = vsel %vm222, %v215, %v219
    %v224 = vand.u32 2147483647, %v179
    %vm225 = vcmp.eq.f32.partialorder %v224, 8.507059e+37
    %v226 = vand.u32 %v179, 2147483648
    %v227 = vor.u32 1.1754944e-38, %v226
    %v228 = vsel %vm225, %v227, %v223
    %v229 = vrcp.pop %v186
    %v230 = vmul.f32 %v186, %v229
    %v231 = vsub.f32 1.0, %v230
    %v232 = vmul.f32 %v229, %v231
    %v233 = vadd.f32 %v229, %v232
    %vm234 = vweird.f32 %v186
    %vm235 = vweird.f32 %v229
    %vm236 = vmor %vm234, %vm235
    %v237 = vsel %vm236, %v229, %v233
    %v238 = vand.u32 2147483647, %v186
    %vm239 = vcmp.eq.f32.partialorder %v238, 8.507059e+37
    %v240 = vand.u32 %v186, 2147483648
    %v241 = vor.u32 1.1754944e-38, %v240
    %v242 = vsel %vm239, %v241, %v237
    %v243 = vmul.f32 %v152, %v200
    %v244 = vmul.f32 %v154, %v214
    %v245 = vmul.f32 %v156, %v228
    %v246 = vmul.f32 %v158, %v242
    %v247 = vlaneseq
    %v248 = vshrl.u32 %v247, 7
    %v249 = vlaneseq
    %v250 = vand.u32 %v249, 127
    %vm251 = vcmp.eq.s32.totalorder %v248, %v250
    %v252 = vsel %vm251, 1.0, 0.0
    %vm253 = vcmp.gt.f32.partialorder %v243, 0.1
    %vm254 = vcmp.gt.f32.partialorder %v244, 0.1
    %vm255 = vcmp.gt.f32.partialorder %v245, 0.1
    %vm256 = vcmp.gt.f32.partialorder %v246, 0.1
    %v257 = vsel %vm253, %v243, %v252
    %v258 = vsel %vm254, %v244, %v252
    %v259 = vsel %vm255, %v245, %v252
    %v260 = vsel %vm256, %v246, %v252
    %v261 = vsel %vm118, %v257, 0.0
    %262 = vadd.xlane.f32.xlu0 %v261
    %v263 = vpop.xlane.xlu0 %262
    %v264 = vsel %vm118, %v258, 0.0
    %265 = vadd.xlane.f32.xlu0 %v264
    %v266 = vpop.xlane.xlu0 %265
    %v267 = vsel %vm118, %v259, 0.0
    %268 = vadd.xlane.f32.xlu0 %v267
    %v269 = vpop.xlane.xlu0 %268
    %v270 = vsel %vm118, %v260, 0.0
    %271 = vadd.xlane.f32.xlu0 %v270
    %v272 = vpop.xlane.xlu0 %271
    %vm273 = vcmp.gt.f32.partialorder %v263, 0.0
    %vm274 = vcmp.gt.f32.partialorder %v266, 0.0
    %vm275 = vcmp.gt.f32.partialorder %v269, 0.0
    %vm276 = vcmp.gt.f32.partialorder %v272, 0.0
    %v277 = vrsqrt.pop %v263
    %v278 = vmul.f32 %v277, %v263
    %v279 = vmul.f32 %v278, %v277
    %v280 = vmul.f32 0.5, %v279
    %v281 = vsub.f32 1.5, %v280
    %v282 = vmul.f32 %v277, %v281
    %vm283 = vweird.f32 %v263
    %vm284 = vweird.f32 %v277
    %vm285 = vmor %vm283, %vm284
    %v286 = vsel %vm285, %v277, %v282
    %v287 = vrsqrt.pop %v266
    %v288 = vmul.f32 %v287, %v266
    %v289 = vmul.f32 %v288, %v287
    %v290 = vmul.f32 0.5, %v289
    %v291 = vsub.f32 1.5, %v290
    %v292 = vmul.f32 %v287, %v291
    %vm293 = vweird.f32 %v266
    %vm294 = vweird.f32 %v287
    %vm295 = vmor %vm293, %vm294
    %v296 = vsel %vm295, %v287, %v292
    %v297 = vrsqrt.pop %v269
    %v298 = vmul.f32 %v297, %v269
    %v299 = vmul.f32 %v298, %v297
    %v300 = vmul.f32 0.5, %v299
    %v301 = vsub.f32 1.5, %v300
    %v302 = vmul.f32 %v297, %v301
    %vm303 = vweird.f32 %v269
    %vm304 = vweird.f32 %v297
    %vm305 = vmor %vm303, %vm304
    %v306 = vsel %vm305, %v297, %v302
    %v307 = vrsqrt.pop %v272
    %v308 = vmul.f32 %v307, %v272
    %v309 = vmul.f32 %v308, %v307
    %v310 = vmul.f32 0.5, %v309
    %v311 = vsub.f32 1.5, %v310
    %v312 = vmul.f32 %v307, %v311
    %vm313 = vweird.f32 %v272
    %vm314 = vweird.f32 %v307
    %vm315 = vmor %vm313, %vm314
    %v316 = vsel %vm315, %v307, %v312
    %v317 = vsel %vm273, %v286, 0.0
    %v318 = vsel %vm274, %v296, 0.0
    %v319 = vsel %vm275, %v306, 0.0
    %v320 = vsel %vm276, %v316, 0.0
    %v321 = vmul.f32 %v317, %v257
    %v322 = vmul.f32 %v318, %v258
    %v323 = vmul.f32 %v319, %v259
    %v324 = vmul.f32 %v320, %v260
    %v325 = vpack.c.bf16 %v321, %v321
    %v326 = vpack.c.bf16 %v322, %v322
    %v327 = vpack.c.bf16 %v323, %v323
    %v328 = vpack.c.bf16 %v324, %v324
    %v329 = vld [vmem:[%s2] sm:$0xf]
    %v330 = vld [vmem:[%s2 + $0x4] sm:$0xf]
    %v331 = vld [vmem:[%s2 + $0x8] sm:$0xf]
    %v332 = vld [vmem:[%s2 + $0xc] sm:$0xf]
    %v333 = vld [vmem:[%s2 + $0x10] sm:$0xf]
    %v334 = vld [vmem:[%s2 + $0x14] sm:$0xf]
    %v335 = vld [vmem:[%s2 + $0x18] sm:$0xf]
    %v336 = vld [vmem:[%s2 + $0x1c] sm:$0xf]
    %v337 = vld [vmem:[%s2 + $0x20] sm:$0xf]
    %v338 = vld [vmem:[%s2 + $0x24] sm:$0xf]
    %v339 = vld [vmem:[%s2 + $0x28] sm:$0xf]
    %v340 = vld [vmem:[%s2 + $0x2c] sm:$0xf]
    %v341 = vld [vmem:[%s2 + $0x30] sm:$0xf]
    %v342 = vld [vmem:[%s2 + $0x34] sm:$0xf]
    %v343 = vld [vmem:[%s2 + $0x38] sm:$0xf]
    %v344 = vld [vmem:[%s2 + $0x3c] sm:$0xf]
    %v361 = vunpack.c.l.b16 %v329
    %v362 = vunpack.c.l.b16 %v330
    %v363 = vunpack.c.l.b16 %v331
    %v364 = vunpack.c.l.b16 %v332
    %v365 = vunpack.c.l.b16 %v333
    %v366 = vunpack.c.l.b16 %v334
    %v367 = vunpack.c.l.b16 %v335
    %v368 = vunpack.c.l.b16 %v336
    %v369 = vunpack.c.l.b16 %v337
    %v370 = vunpack.c.l.b16 %v338
    %v371 = vunpack.c.l.b16 %v339
    %v372 = vunpack.c.l.b16 %v340
    %v373 = vunpack.c.l.b16 %v341
    %v374 = vunpack.c.l.b16 %v342
    %v375 = vunpack.c.l.b16 %v343
    %v376 = vunpack.c.l.b16 %v344
    %v377 = vpack.c.b16 %v362, %v361
    %v378 = vpack.c.b16 %v364, %v363
    %v379 = vpack.c.b16 %v366, %v365
    %v380 = vpack.c.b16 %v368, %v367
    %v381 = vpack.c.b16 %v370, %v369
    %v382 = vpack.c.b16 %v372, %v371
    %v383 = vpack.c.b16 %v374, %v373
    %v384 = vpack.c.b16 %v376, %v375
    %393 = vmatpush.bf16.msra.mxu0 %v384
    %394 = vmatpush.bf16.msra.mxu0 %v383
    %395 = vmatpush.bf16.msra.mxu0 %v382
    %396 = vmatpush.bf16.msra.mxu0 %v381
    %397 = vmatpush.bf16.msra.mxu0 %v380
    %398 = vmatpush.bf16.msra.mxu0 %v379
    %399 = vmatpush.bf16.msra.mxu0 %v378
    %400 = vmatpush.bf16.msra.mxu0 %v377
    %401 = vmatmul.bf16.gmra.mxu0 %v62
    %v402 = vpop.f32.mrf.mxu0
    %v403 = vadd.f32 0.0, %v402
    %v404 = vpop.f32.mrf.mxu0
    %405 = vdwg.mxu0
    %406 = vmatpush.bf16.msra.mxu0 %v384
    %407 = vmatpush.bf16.msra.mxu0 %v383
    %408 = vmatpush.bf16.msra.mxu0 %v382
    %409 = vmatpush.bf16.msra.mxu0 %v381
    %410 = vmatpush.bf16.msra.mxu0 %v380
    %411 = vmatpush.bf16.msra.mxu0 %v379
    %412 = vmatpush.bf16.msra.mxu0 %v378
    %413 = vmatpush.bf16.msra.mxu0 %v377
    %414 = vmatmul.bf16.gmra.mxu0 %v63
    %v415 = vpop.f32.mrf.mxu0
    %v416 = vadd.f32 0.0, %v415
    %v417 = vpop.f32.mrf.mxu0
    %418 = vdwg.mxu0
    %419 = vmatpush.bf16.msra.mxu0 %v384
    %420 = vmatpush.bf16.msra.mxu0 %v383
    %421 = vmatpush.bf16.msra.mxu0 %v382
    %422 = vmatpush.bf16.msra.mxu0 %v381
    %423 = vmatpush.bf16.msra.mxu0 %v380
    %424 = vmatpush.bf16.msra.mxu0 %v379
    %425 = vmatpush.bf16.msra.mxu0 %v378
    %426 = vmatpush.bf16.msra.mxu0 %v377
    %427 = vmatmul.bf16.gmra.mxu0 %v64
    %v428 = vpop.f32.mrf.mxu0
    %v429 = vadd.f32 0.0, %v428
    %v430 = vpop.f32.mrf.mxu0
    %431 = vdwg.mxu0
    %432 = vmatpush.bf16.msra.mxu0 %v384
    %433 = vmatpush.bf16.msra.mxu0 %v383
    %434 = vmatpush.bf16.msra.mxu0 %v382
    %435 = vmatpush.bf16.msra.mxu0 %v381
    %436 = vmatpush.bf16.msra.mxu0 %v380
    %437 = vmatpush.bf16.msra.mxu0 %v379
    %438 = vmatpush.bf16.msra.mxu0 %v378
    %439 = vmatpush.bf16.msra.mxu0 %v377
    %440 = vmatmul.bf16.gmra.mxu0 %v65
    %v441 = vpop.f32.mrf.mxu0
    %v442 = vadd.f32 0.0, %v441
    %v443 = vpop.f32.mrf.mxu0
    %444 = vdwg.mxu0
    %v445 = vmul.f32 %v317, %v403
    %v446 = vmul.f32 %v318, %v416
    %v447 = vmul.f32 %v319, %v429
    %v448 = vmul.f32 %v320, %v442
    %v449 = vpack.c.bf16 %v445, %v445
    %v450 = vpack.c.bf16 %v446, %v446
    %v451 = vpack.c.bf16 %v447, %v447
    %v452 = vpack.c.bf16 %v448, %v448
    %v453 = vld [vmem:[%s3] sm:$0x1]
    %v455 = vperm.slane %v453, 0
    %v458 = vsel %vm118, %v325, 0
    %vm460 = vcmask 1043456
    %v462 = vsel %vm460, %v449, 0
    %464 = vmatpush.bf16.msra.mxu0 0
    %465 = vmatpush.bf16.msra.mxu0 0
    %466 = vmatpush.bf16.msra.mxu0 0
    %467 = vmatpush.bf16.msra.mxu0 0
    %468 = vmatpush.bf16.msra.mxu0 0
    %469 = vmatpush.bf16.msra.mxu0 0
    %470 = vmatpush.bf16.msra.mxu0 0
    %471 = vmatpush.bf16.msra.mxu0 %v462
    %472 = vmatmul.bf16.gmra.mxu0 %v458
    %v473 = vpop.f32.mrf.mxu0
    %v474 = vadd.f32 %v455, %v473
    %v475 = vpop.f32.mrf.mxu0
    %476 = vdwg.mxu0
    %v478 = vsel %vm118, %v326, 0
    %v481 = vsel %vm460, %v450, 0
    %483 = vmatpush.bf16.msra.mxu0 0
    %484 = vmatpush.bf16.msra.mxu0 0
    %485 = vmatpush.bf16.msra.mxu0 0
    %486 = vmatpush.bf16.msra.mxu0 0
    %487 = vmatpush.bf16.msra.mxu0 0
    %488 = vmatpush.bf16.msra.mxu0 0
    %489 = vmatpush.bf16.msra.mxu0 0
    %490 = vmatpush.bf16.msra.mxu0 %v481
    %491 = vmatmul.bf16.gmra.mxu0 %v478
    %v492 = vpop.f32.mrf.mxu0
    %v493 = vadd.f32 %v455, %v492
    %v494 = vpop.f32.mrf.mxu0
    %495 = vdwg.mxu0
    %v497 = vsel %vm118, %v327, 0
    %v500 = vsel %vm460, %v451, 0
    %502 = vmatpush.bf16.msra.mxu0 0
    %503 = vmatpush.bf16.msra.mxu0 0
    %504 = vmatpush.bf16.msra.mxu0 0
    %505 = vmatpush.bf16.msra.mxu0 0
    %506 = vmatpush.bf16.msra.mxu0 0
    %507 = vmatpush.bf16.msra.mxu0 0
    %508 = vmatpush.bf16.msra.mxu0 0
    %509 = vmatpush.bf16.msra.mxu0 %v500
    %510 = vmatmul.bf16.gmra.mxu0 %v497
    %v511 = vpop.f32.mrf.mxu0
    %v512 = vadd.f32 %v455, %v511
    %v513 = vpop.f32.mrf.mxu0
    %514 = vdwg.mxu0
    %v516 = vsel %vm118, %v328, 0
    %v519 = vsel %vm460, %v452, 0
    %521 = vmatpush.bf16.msra.mxu0 0
    %522 = vmatpush.bf16.msra.mxu0 0
    %523 = vmatpush.bf16.msra.mxu0 0
    %524 = vmatpush.bf16.msra.mxu0 0
    %525 = vmatpush.bf16.msra.mxu0 0
    %526 = vmatpush.bf16.msra.mxu0 0
    %527 = vmatpush.bf16.msra.mxu0 0
    %528 = vmatpush.bf16.msra.mxu0 %v519
    %529 = vmatmul.bf16.gmra.mxu0 %v516
    %v530 = vpop.f32.mrf.mxu0
    %v531 = vadd.f32 %v455, %v530
    %v532 = vpop.f32.mrf.mxu0
    %533 = vdwg.mxu0
    %v534 = vmax.f32 %v474, 0.0
    %v535 = vmax.f32 %v493, 0.0
    %v536 = vmax.f32 %v512, 0.0
    %v537 = vmax.f32 %v531, 0.0
    %v538 = vld [vmem:[#allocation2] sm:$0xf]
    %v539 = vld [vmem:[#allocation2 + $0x4] sm:$0xf]
    %v540 = vld [vmem:[#allocation2 + $0x8] sm:$0xf]
    %v541 = vld [vmem:[#allocation2 + $0xc] sm:$0xf]
    %v542 = vld [vmem:[#allocation2 + $0x10] sm:$0xf]
    %v543 = vld [vmem:[#allocation2 + $0x14] sm:$0xf]
    %v544 = vld [vmem:[#allocation2 + $0x18] sm:$0xf]
    %v545 = vld [vmem:[#allocation2 + $0x1c] sm:$0xf]
    %v546 = vld [vmem:[#allocation2 + $0x20] sm:$0xf]
    %v547 = vld [vmem:[#allocation2 + $0x24] sm:$0xf]
    %v548 = vld [vmem:[#allocation2 + $0x28] sm:$0xf]
    %v549 = vld [vmem:[#allocation2 + $0x2c] sm:$0xf]
    %v550 = vld [vmem:[#allocation2 + $0x30] sm:$0xf]
    %v551 = vld [vmem:[#allocation2 + $0x34] sm:$0xf]
    %v552 = vld [vmem:[#allocation2 + $0x38] sm:$0xf]
    %v553 = vld [vmem:[#allocation2 + $0x3c] sm:$0xf]
    %v554 = vpack.c.bf16 %v534, %v534
    %v555 = vpack.c.bf16 %v535, %v535
    %v556 = vpack.c.bf16 %v536, %v536
    %v557 = vpack.c.bf16 %v537, %v537
    %v574 = vunpack.c.l.b16 %v538
    %v575 = vunpack.c.l.b16 %v539
    %v576 = vunpack.c.l.b16 %v540
    %v577 = vunpack.c.l.b16 %v541
    %v578 = vunpack.c.l.b16 %v542
    %v579 = vunpack.c.l.b16 %v543
    %v580 = vunpack.c.l.b16 %v544
    %v581 = vunpack.c.l.b16 %v545
    %v582 = vunpack.c.l.b16 %v546
    %v583 = vunpack.c.l.b16 %v547
    %v584 = vunpack.c.l.b16 %v548
    %v585 = vunpack.c.l.b16 %v549
    %v586 = vunpack.c.l.b16 %v550
    %v587 = vunpack.c.l.b16 %v551
    %v588 = vunpack.c.l.b16 %v552
    %v589 = vunpack.c.l.b16 %v553
    %v590 = vpack.c.b16 %v575, %v574
    %v591 = vpack.c.b16 %v577, %v576
    %v592 = vpack.c.b16 %v579, %v578
    %v593 = vpack.c.b16 %v581, %v580
    %v594 = vpack.c.b16 %v583, %v582
    %v595 = vpack.c.b16 %v585, %v584
    %v596 = vpack.c.b16 %v587, %v586
    %v597 = vpack.c.b16 %v589, %v588
    %606 = vmatpush.bf16.msra.mxu0 %v597
    %607 = vmatpush.bf16.msra.mxu0 %v596
    %608 = vmatpush.bf16.msra.mxu0 %v595
    %609 = vmatpush.bf16.msra.mxu0 %v594
    %610 = vmatpush.bf16.msra.mxu0 %v593
    %611 = vmatpush.bf16.msra.mxu0 %v592
    %612 = vmatpush.bf16.msra.mxu0 %v591
    %613 = vmatpush.bf16.msra.mxu0 %v590
    %614 = vmatmul.bf16.gmra.mxu0 %v554
    %v615 = vpop.f32.mrf.mxu0
    %v616 = vadd.f32 0.0, %v615
    %v617 = vpop.f32.mrf.mxu0
    %618 = vdwg.mxu0
    %619 = vmatpush.bf16.msra.mxu0 %v597
    %620 = vmatpush.bf16.msra.mxu0 %v596
    %621 = vmatpush.bf16.msra.mxu0 %v595
    %622 = vmatpush.bf16.msra.mxu0 %v594
    %623 = vmatpush.bf16.msra.mxu0 %v593
    %624 = vmatpush.bf16.msra.mxu0 %v592
    %625 = vmatpush.bf16.msra.mxu0 %v591
    %626 = vmatpush.bf16.msra.mxu0 %v590
    %627 = vmatmul.bf16.gmra.mxu0 %v555
    %v628 = vpop.f32.mrf.mxu0
    %v629 = vadd.f32 0.0, %v628
    %v630 = vpop.f32.mrf.mxu0
    %631 = vdwg.mxu0
    %632 = vmatpush.bf16.msra.mxu0 %v597
    %633 = vmatpush.bf16.msra.mxu0 %v596
    %634 = vmatpush.bf16.msra.mxu0 %v595
    %635 = vmatpush.bf16.msra.mxu0 %v594
    %636 = vmatpush.bf16.msra.mxu0 %v593
    %637 = vmatpush.bf16.msra.mxu0 %v592
    %638 = vmatpush.bf16.msra.mxu0 %v591
    %639 = vmatpush.bf16.msra.mxu0 %v590
    %640 = vmatmul.bf16.gmra.mxu0 %v556
    %v641 = vpop.f32.mrf.mxu0
    %v642 = vadd.f32 0.0, %v641
    %v643 = vpop.f32.mrf.mxu0
    %644 = vdwg.mxu0
    %645 = vmatpush.bf16.msra.mxu0 %v597
    %646 = vmatpush.bf16.msra.mxu0 %v596
    %647 = vmatpush.bf16.msra.mxu0 %v595
    %648 = vmatpush.bf16.msra.mxu0 %v594
    %649 = vmatpush.bf16.msra.mxu0 %v593
    %650 = vmatpush.bf16.msra.mxu0 %v592
    %651 = vmatpush.bf16.msra.mxu0 %v591
    %652 = vmatpush.bf16.msra.mxu0 %v590
    %653 = vmatmul.bf16.gmra.mxu0 %v557
    %v654 = vpop.f32.mrf.mxu0
    %v655 = vadd.f32 0.0, %v654
    %v656 = vpop.f32.mrf.mxu0
    %657 = vdwg.mxu0
    %v658 = vmul.f32 %v317, %v616
    %v659 = vmul.f32 %v318, %v629
    %v660 = vmul.f32 %v319, %v642
    %v661 = vmul.f32 %v320, %v655
    %v662 = vpack.c.bf16 %v658, %v658
    %v663 = vpack.c.bf16 %v659, %v659
    %v664 = vpack.c.bf16 %v660, %v660
    %v665 = vpack.c.bf16 %v661, %v661
    %v666 = vld [vmem:[%s5] sm:$0x1]
    %v668 = vperm.slane %v666, 0
    %v671 = vsel %vm460, %v662, 0
    %673 = vmatpush.bf16.msra.mxu0 0
    %674 = vmatpush.bf16.msra.mxu0 0
    %675 = vmatpush.bf16.msra.mxu0 0
    %676 = vmatpush.bf16.msra.mxu0 0
    %677 = vmatpush.bf16.msra.mxu0 0
    %678 = vmatpush.bf16.msra.mxu0 0
    %679 = vmatpush.bf16.msra.mxu0 0
    %680 = vmatpush.bf16.msra.mxu0 %v671
    %681 = vmatmul.bf16.gmra.mxu0 %v458
    %v682 = vpop.f32.mrf.mxu0
    %v683 = vadd.f32 %v668, %v682
    %v684 = vpop.f32.mrf.mxu0
    %685 = vdwg.mxu0
    %v687 = vsel %vm460, %v663, 0
    %689 = vmatpush.bf16.msra.mxu0 0
    %690 = vmatpush.bf16.msra.mxu0 0
    %691 = vmatpush.bf16.msra.mxu0 0
    %692 = vmatpush.bf16.msra.mxu0 0
    %693 = vmatpush.bf16.msra.mxu0 0
    %694 = vmatpush.bf16.msra.mxu0 0
    %695 = vmatpush.bf16.msra.mxu0 0
    %696 = vmatpush.bf16.msra.mxu0 %v687
    %697 = vmatmul.bf16.gmra.mxu0 %v478
    %v698 = vpop.f32.mrf.mxu0
    %v699 = vadd.f32 %v668, %v698
    %v700 = vpop.f32.mrf.mxu0
    %701 = vdwg.mxu0
    %v703 = vsel %vm460, %v664, 0
    %705 = vmatpush.bf16.msra.mxu0 0
    %706 = vmatpush.bf16.msra.mxu0 0
    %707 = vmatpush.bf16.msra.mxu0 0
    %708 = vmatpush.bf16.msra.mxu0 0
    %709 = vmatpush.bf16.msra.mxu0 0
    %710 = vmatpush.bf16.msra.mxu0 0
    %711 = vmatpush.bf16.msra.mxu0 0
    %712 = vmatpush.bf16.msra.mxu0 %v703
    %713 = vmatmul.bf16.gmra.mxu0 %v497
    %v714 = vpop.f32.mrf.mxu0
    %v715 = vadd.f32 %v668, %v714
    %v716 = vpop.f32.mrf.mxu0
    %717 = vdwg.mxu0
    %v719 = vsel %vm460, %v665, 0
    %721 = vmatpush.bf16.msra.mxu0 0
    %722 = vmatpush.bf16.msra.mxu0 0
    %723 = vmatpush.bf16.msra.mxu0 0
    %724 = vmatpush.bf16.msra.mxu0 0
    %725 = vmatpush.bf16.msra.mxu0 0
    %726 = vmatpush.bf16.msra.mxu0 0
    %727 = vmatpush.bf16.msra.mxu0 0
    %728 = vmatpush.bf16.msra.mxu0 %v719
    %729 = vmatmul.bf16.gmra.mxu0 %v516
    %v730 = vpop.f32.mrf.mxu0
    %v731 = vadd.f32 %v668, %v730
    %v732 = vpop.f32.mrf.mxu0
    %733 = vdwg.mxu0
    %v734 = vld [vmem:[%s1] sm:$0x1]
    %v735 = vld [vmem:[%s1 + $0x1] sm:$0x1]
    %v736 = vld [vmem:[%s1 + $0x2] sm:$0x1]
    %v737 = vld [vmem:[%s1 + $0x3] sm:$0x1]
    %vm738 = vcmask 57344
    %v739 = vsel %vm738, %v734, 0.0
    %740 = vadd.xlane.f32.xlu0 %v739
    %v741 = vpop.xlane.xlu0 %740
    %v742 = vsel %vm738, %v735, 0.0
    %743 = vadd.xlane.f32.xlu0 %v742
    %v744 = vpop.xlane.xlu0 %743
    %v745 = vsel %vm738, %v736, 0.0
    %746 = vadd.xlane.f32.xlu0 %v745
    %v747 = vpop.xlane.xlu0 %746
    %v748 = vsel %vm738, %v737, 0.0
    %749 = vadd.xlane.f32.xlu0 %v748
    %v750 = vpop.xlane.xlu0 %749
    %v751 = vmax.f32 %v741, 1.0
    %v752 = vmax.f32 %v744, 1.0
    %v753 = vmax.f32 %v747, 1.0
    %v754 = vmax.f32 %v750, 1.0
    %v756 = vsel %vm118, %v734, 0
    %758 = vmatpush.msra.mxu0 0.0
    %759 = vmatpush.msra.mxu0 0.0
    %760 = vmatpush.msra.mxu0 0.0
    %761 = vmatpush.msra.mxu0 0.0
    %762 = vmatpush.msra.mxu0 0.0
    %763 = vmatpush.msra.mxu0 0.0
    %764 = vmatpush.msra.mxu0 0.0
    %765 = vmatpush.msra.mxu0 0.0
    %766 = vmatpush.msra.mxu0 0.0
    %767 = vmatpush.msra.mxu0 0.0
    %768 = vmatpush.msra.mxu0 0.0
    %769 = vmatpush.msra.mxu0 0.0
    %770 = vmatpush.msra.mxu0 0.0
    %771 = vmatpush.msra.mxu0 0.0
    %772 = vmatpush.msra.mxu0 0.0
    %773 = vmatpush.msra.mxu0 %v683
    %774 = vmatmul.f32.gmra.mxu0 %v756
    %v775 = vpop.f32.mrf.mxu0
    %v776 = vadd.f32 0.0, %v775
    %777 = vdwg.mxu0
    %v779 = vsel %vm118, %v735, 0
    %781 = vmatpush.msra.mxu0 0.0
    %782 = vmatpush.msra.mxu0 0.0
    %783 = vmatpush.msra.mxu0 0.0
    %784 = vmatpush.msra.mxu0 0.0
    %785 = vmatpush.msra.mxu0 0.0
    %786 = vmatpush.msra.mxu0 0.0
    %787 = vmatpush.msra.mxu0 0.0
    %788 = vmatpush.msra.mxu0 0.0
    %789 = vmatpush.msra.mxu0 0.0
    %790 = vmatpush.msra.mxu0 0.0
    %791 = vmatpush.msra.mxu0 0.0
    %792 = vmatpush.msra.mxu0 0.0
    %793 = vmatpush.msra.mxu0 0.0
    %794 = vmatpush.msra.mxu0 0.0
    %795 = vmatpush.msra.mxu0 0.0
    %796 = vmatpush.msra.mxu0 %v699
    %797 = vmatmul.f32.gmra.mxu0 %v779
    %v798 = vpop.f32.mrf.mxu0
    %v799 = vadd.f32 0.0, %v798
    %800 = vdwg.mxu0
    %v802 = vsel %vm118, %v736, 0
    %804 = vmatpush.msra.mxu0 0.0
    %805 = vmatpush.msra.mxu0 0.0
    %806 = vmatpush.msra.mxu0 0.0
    %807 = vmatpush.msra.mxu0 0.0
    %808 = vmatpush.msra.mxu0 0.0
    %809 = vmatpush.msra.mxu0 0.0
    %810 = vmatpush.msra.mxu0 0.0
    %811 = vmatpush.msra.mxu0 0.0
    %812 = vmatpush.msra.mxu0 0.0
    %813 = vmatpush.msra.mxu0 0.0
    %814 = vmatpush.msra.mxu0 0.0
    %815 = vmatpush.msra.mxu0 0.0
    %816 = vmatpush.msra.mxu0 0.0
    %817 = vmatpush.msra.mxu0 0.0
    %818 = vmatpush.msra.mxu0 0.0
    %819 = vmatpush.msra.mxu0 %v715
    %820 = vmatmul.f32.gmra.mxu0 %v802
    %v821 = vpop.f32.mrf.mxu0
    %v822 = vadd.f32 0.0, %v821
    %823 = vdwg.mxu0
    %v825 = vsel %vm118, %v737, 0
    %827 = vmatpush.msra.mxu0 0.0
    %828 = vmatpush.msra.mxu0 0.0
    %829 = vmatpush.msra.mxu0 0.0
    %830 = vmatpush.msra.mxu0 0.0
    %831 = vmatpush.msra.mxu0 0.0
    %832 = vmatpush.msra.mxu0 0.0
    %833 = vmatpush.msra.mxu0 0.0
    %834 = vmatpush.msra.mxu0 0.0
    %835 = vmatpush.msra.mxu0 0.0
    %836 = vmatpush.msra.mxu0 0.0
    %837 = vmatpush.msra.mxu0 0.0
    %838 = vmatpush.msra.mxu0 0.0
    %839 = vmatpush.msra.mxu0 0.0
    %840 = vmatpush.msra.mxu0 0.0
    %841 = vmatpush.msra.mxu0 0.0
    %842 = vmatpush.msra.mxu0 %v731
    %843 = vmatmul.f32.gmra.mxu0 %v825
    %v844 = vpop.f32.mrf.mxu0
    %v845 = vadd.f32 0.0, %v844
    %846 = vdwg.mxu0
    %v847 = vrcp.pop %v751
    %v848 = vmul.f32 %v751, %v847
    %v849 = vsub.f32 1.0, %v848
    %v850 = vmul.f32 %v847, %v849
    %v851 = vadd.f32 %v847, %v850
    %vm852 = vweird.f32 %v751
    %vm853 = vweird.f32 %v847
    %vm854 = vmor %vm852, %vm853
    %v855 = vsel %vm854, %v847, %v851
    %v856 = vand.u32 2147483647, %v751
    %vm857 = vcmp.eq.f32.partialorder %v856, 8.507059e+37
    %v858 = vand.u32 %v751, 2147483648
    %v859 = vor.u32 1.1754944e-38, %v858
    %v860 = vsel %vm857, %v859, %v855
    %v861 = vrcp.pop %v752
    %v862 = vmul.f32 %v752, %v861
    %v863 = vsub.f32 1.0, %v862
    %v864 = vmul.f32 %v861, %v863
    %v865 = vadd.f32 %v861, %v864
    %vm866 = vweird.f32 %v752
    %vm867 = vweird.f32 %v861
    %vm868 = vmor %vm866, %vm867
    %v869 = vsel %vm868, %v861, %v865
    %v870 = vand.u32 2147483647, %v752
    %vm871 = vcmp.eq.f32.partialorder %v870, 8.507059e+37
    %v872 = vand.u32 %v752, 2147483648
    %v873 = vor.u32 1.1754944e-38, %v872
    %v874 = vsel %vm871, %v873, %v869
    %v875 = vrcp.pop %v753
    %v876 = vmul.f32 %v753, %v875
    %v877 = vsub.f32 1.0, %v876
    %v878 = vmul.f32 %v875, %v877
    %v879 = vadd.f32 %v875, %v878
    %vm880 = vweird.f32 %v753
    %vm881 = vweird.f32 %v875
    %vm882 = vmor %vm880, %vm881
    %v883 = vsel %vm882, %v875, %v879
    %v884 = vand.u32 2147483647, %v753
    %vm885 = vcmp.eq.f32.partialorder %v884, 8.507059e+37
    %v886 = vand.u32 %v753, 2147483648
    %v887 = vor.u32 1.1754944e-38, %v886
    %v888 = vsel %vm885, %v887, %v883
    %v889 = vrcp.pop %v754
    %v890 = vmul.f32 %v754, %v889
    %v891 = vsub.f32 1.0, %v890
    %v892 = vmul.f32 %v889, %v891
    %v893 = vadd.f32 %v889, %v892
    %vm894 = vweird.f32 %v754
    %vm895 = vweird.f32 %v889
    %vm896 = vmor %vm894, %vm895
    %v897 = vsel %vm896, %v889, %v893
    %v898 = vand.u32 2147483647, %v754
    %vm899 = vcmp.eq.f32.partialorder %v898, 8.507059e+37
    %v900 = vand.u32 %v754, 2147483648
    %v901 = vor.u32 1.1754944e-38, %v900
    %v902 = vsel %vm899, %v901, %v897
    %v903 = vmul.f32 %v776, %v860
    %v904 = vmul.f32 %v799, %v874
    %v905 = vmul.f32 %v822, %v888
    %v906 = vmul.f32 %v845, %v902
    %v907 = vld [vmem:[#allocation4] sm:$0xf]
    %v908 = vld [vmem:[#allocation4 + $0x4] sm:$0xf]
    %v909 = vld [vmem:[#allocation4 + $0x8] sm:$0xf]
    %v910 = vld [vmem:[#allocation4 + $0xc] sm:$0xf]
    %v911 = vld [vmem:[#allocation4 + $0x10] sm:$0xf]
    %v912 = vld [vmem:[#allocation4 + $0x14] sm:$0xf]
    %v913 = vld [vmem:[#allocation4 + $0x18] sm:$0xf]
    %v914 = vld [vmem:[#allocation4 + $0x1c] sm:$0xf]
    %v915 = vld [vmem:[#allocation4 + $0x20] sm:$0xf]
    %v916 = vld [vmem:[#allocation4 + $0x24] sm:$0xf]
    %v917 = vld [vmem:[#allocation4 + $0x28] sm:$0xf]
    %v918 = vld [vmem:[#allocation4 + $0x2c] sm:$0xf]
    %v919 = vld [vmem:[#allocation4 + $0x30] sm:$0xf]
    %v920 = vld [vmem:[#allocation4 + $0x34] sm:$0xf]
    %v921 = vld [vmem:[#allocation4 + $0x38] sm:$0xf]
    %v922 = vld [vmem:[#allocation4 + $0x3c] sm:$0xf]
    %v923 = vpack.c.bf16 %v903, %v903
    %v924 = vpack.c.bf16 %v904, %v904
    %v925 = vpack.c.bf16 %v905, %v905
    %v926 = vpack.c.bf16 %v906, %v906
    %v927 = vld [vmem:[%s7] sm:$0x1]
    %v944 = vunpack.c.l.b16 %v907
    %v945 = vunpack.c.l.b16 %v908
    %v946 = vunpack.c.l.b16 %v909
    %v947 = vunpack.c.l.b16 %v910
    %v948 = vunpack.c.l.b16 %v911
    %v949 = vunpack.c.l.b16 %v912
    %v950 = vunpack.c.l.b16 %v913
    %v951 = vunpack.c.l.b16 %v914
    %v952 = vunpack.c.l.b16 %v915
    %v953 = vunpack.c.l.b16 %v916
    %v954 = vunpack.c.l.b16 %v917
    %v955 = vunpack.c.l.b16 %v918
    %v956 = vunpack.c.l.b16 %v919
    %v957 = vunpack.c.l.b16 %v920
    %v958 = vunpack.c.l.b16 %v921
    %v959 = vunpack.c.l.b16 %v922
    %v960 = vpack.c.b16 %v945, %v944
    %v961 = vpack.c.b16 %v947, %v946
    %v962 = vpack.c.b16 %v949, %v948
    %v963 = vpack.c.b16 %v951, %v950
    %v964 = vpack.c.b16 %v953, %v952
    %v965 = vpack.c.b16 %v955, %v954
    %v966 = vpack.c.b16 %v957, %v956
    %v967 = vpack.c.b16 %v959, %v958
    %976 = vmatpush.bf16.msra.mxu0 %v967
    %977 = vmatpush.bf16.msra.mxu0 %v966
    %978 = vmatpush.bf16.msra.mxu0 %v965
    %979 = vmatpush.bf16.msra.mxu0 %v964
    %980 = vmatpush.bf16.msra.mxu0 %v963
    %981 = vmatpush.bf16.msra.mxu0 %v962
    %982 = vmatpush.bf16.msra.mxu0 %v961
    %983 = vmatpush.bf16.msra.mxu0 %v960
    %984 = vmatmul.bf16.gmra.mxu0 %v923
    %v985 = vpop.f32.mrf.mxu0
    %v986 = vadd.f32 %v927, %v985
    %v987 = vpop.f32.mrf.mxu0
    %988 = vdwg.mxu0
    %989 = vmatpush.bf16.msra.mxu0 %v967
    %990 = vmatpush.bf16.msra.mxu0 %v966
    %991 = vmatpush.bf16.msra.mxu0 %v965
    %992 = vmatpush.bf16.msra.mxu0 %v964
    %993 = vmatpush.bf16.msra.mxu0 %v963
    %994 = vmatpush.bf16.msra.mxu0 %v962
    %995 = vmatpush.bf16.msra.mxu0 %v961
    %996 = vmatpush.bf16.msra.mxu0 %v960
    %997 = vmatmul.bf16.gmra.mxu0 %v924
    %v998 = vpop.f32.mrf.mxu0
    %v999 = vadd.f32 %v927, %v998
    %v1000 = vpop.f32.mrf.mxu0
    %1001 = vdwg.mxu0
    %1002 = vmatpush.bf16.msra.mxu0 %v967
    %1003 = vmatpush.bf16.msra.mxu0 %v966
    %1004 = vmatpush.bf16.msra.mxu0 %v965
    %1005 = vmatpush.bf16.msra.mxu0 %v964
    %1006 = vmatpush.bf16.msra.mxu0 %v963
    %1007 = vmatpush.bf16.msra.mxu0 %v962
    %1008 = vmatpush.bf16.msra.mxu0 %v961
    %1009 = vmatpush.bf16.msra.mxu0 %v960
    %1010 = vmatmul.bf16.gmra.mxu0 %v925
    %v1011 = vpop.f32.mrf.mxu0
    %v1012 = vadd.f32 %v927, %v1011
    %v1013 = vpop.f32.mrf.mxu0
    %1014 = vdwg.mxu0
    %1015 = vmatpush.bf16.msra.mxu0 %v967
    %1016 = vmatpush.bf16.msra.mxu0 %v966
    %1017 = vmatpush.bf16.msra.mxu0 %v965
    %1018 = vmatpush.bf16.msra.mxu0 %v964
    %1019 = vmatpush.bf16.msra.mxu0 %v963
    %1020 = vmatpush.bf16.msra.mxu0 %v962
    %1021 = vmatpush.bf16.msra.mxu0 %v961
    %1022 = vmatpush.bf16.msra.mxu0 %v960
    %1023 = vmatmul.bf16.gmra.mxu0 %v926
    %v1024 = vpop.f32.mrf.mxu0
    %v1025 = vadd.f32 %v927, %v1024
    %v1026 = vpop.f32.mrf.mxu0
    %1027 = vdwg.mxu0
    %v1028 = vxor.u32 %v986, 2147483648
    %v1029 = vxor.u32 %v999, 2147483648
    %v1030 = vxor.u32 %v1012, 2147483648
    %v1031 = vxor.u32 %v1025, 2147483648
    %v1032 = vmul.f32 %v1028, 1.442695
    %v1033 = vpow.pop %v1032
    %v1034 = vmul.f32 %v1029, 1.442695
    %v1035 = vpow.pop %v1034
    %v1036 = vmul.f32 %v1030, 1.442695
    %v1037 = vpow.pop %v1036
    %v1038 = vmul.f32 %v1031, 1.442695
    %v1039 = vpow.pop %v1038
    %v1040 = vadd.f32 %v1033, 1.0
    %v1041 = vadd.f32 %v1035, 1.0
    %v1042 = vadd.f32 %v1037, 1.0
    %v1043 = vadd.f32 %v1039, 1.0
    %v1044 = vrcp.pop %v1040
    %v1045 = vmul.f32 %v1040, %v1044
    %v1046 = vsub.f32 1.0, %v1045
    %v1047 = vmul.f32 %v1044, %v1046
    %v1048 = vadd.f32 %v1044, %v1047
    %vm1049 = vweird.f32 %v1040
    %vm1050 = vweird.f32 %v1044
    %vm1051 = vmor %vm1049, %vm1050
    %v1052 = vsel %vm1051, %v1044, %v1048
    %v1053 = vand.u32 2147483647, %v1040
    %vm1054 = vcmp.eq.f32.partialorder %v1053, 8.507059e+37
    %v1055 = vand.u32 %v1040, 2147483648
    %v1056 = vor.u32 1.1754944e-38, %v1055
    %v1057 = vsel %vm1054, %v1056, %v1052
    %v1058 = vmul.f32 1.0, %v1057
    %v1059 = vrcp.pop %v1041
    %v1060 = vmul.f32 %v1041, %v1059
    %v1061 = vsub.f32 1.0, %v1060
    %v1062 = vmul.f32 %v1059, %v1061
    %v1063 = vadd.f32 %v1059, %v1062
    %vm1064 = vweird.f32 %v1041
    %vm1065 = vweird.f32 %v1059
    %vm1066 = vmor %vm1064, %vm1065
    %v1067 = vsel %vm1066, %v1059, %v1063
    %v1068 = vand.u32 2147483647, %v1041
    %vm1069 = vcmp.eq.f32.partialorder %v1068, 8.507059e+37
    %v1070 = vand.u32 %v1041, 2147483648
    %v1071 = vor.u32 1.1754944e-38, %v1070
    %v1072 = vsel %vm1069, %v1071, %v1067
    %v1073 = vmul.f32 1.0, %v1072
    %v1074 = vrcp.pop %v1042
    %v1075 = vmul.f32 %v1042, %v1074
    %v1076 = vsub.f32 1.0, %v1075
    %v1077 = vmul.f32 %v1074, %v1076
    %v1078 = vadd.f32 %v1074, %v1077
    %vm1079 = vweird.f32 %v1042
    %vm1080 = vweird.f32 %v1074
    %vm1081 = vmor %vm1079, %vm1080
    %v1082 = vsel %vm1081, %v1074, %v1078
    %v1083 = vand.u32 2147483647, %v1042
    %vm1084 = vcmp.eq.f32.partialorder %v1083, 8.507059e+37
    %v1085 = vand.u32 %v1042, 2147483648
    %v1086 = vor.u32 1.1754944e-38, %v1085
    %v1087 = vsel %vm1084, %v1086, %v1082
    %v1088 = vmul.f32 1.0, %v1087
    %v1089 = vrcp.pop %v1043
    %v1090 = vmul.f32 %v1043, %v1089
    %v1091 = vsub.f32 1.0, %v1090
    %v1092 = vmul.f32 %v1089, %v1091
    %v1093 = vadd.f32 %v1089, %v1092
    %vm1094 = vweird.f32 %v1043
    %vm1095 = vweird.f32 %v1089
    %vm1096 = vmor %vm1094, %vm1095
    %v1097 = vsel %vm1096, %v1089, %v1093
    %v1098 = vand.u32 2147483647, %v1043
    %vm1099 = vcmp.eq.f32.partialorder %v1098, 8.507059e+37
    %v1100 = vand.u32 %v1043, 2147483648
    %v1101 = vor.u32 1.1754944e-38, %v1100
    %v1102 = vsel %vm1099, %v1101, %v1097
    %v1103 = vmul.f32 1.0, %v1102
    %1104 = vst [vmem:[%s8] sm:$0x1] %v1058
    %1105 = vst [vmem:[%s8 + $0x1] sm:$0x1] %v1073
    %1106 = vst [vmem:[%s8 + $0x2] sm:$0x1] %v1088
    %1107 = vst [vmem:[%s8 + $0x3] sm:$0x1] %v1103
    // Predicated region
    $region42: #{roberta_gcn_forward.1} parent=1 // pred_check
      _
    $region43: #{roberta_gcn_forward.1} parent=1 // pred_check_branch
      %1109 = sbr.rel (0) target = $region45
    $region44: #{roberta_gcn_forward.1} parent=1 // pred_region
      _
    $region45: #{roberta_gcn_forward.1} parent=1 // pred_fallthru
      _
    // Predicated region
    $region46: #{roberta_gcn_forward.1} parent=1 // pred_check
      _
    $region47: #{roberta_gcn_forward.1} parent=1 // pred_check_branch
      %1111 = sbr.rel (0) target = $region49
    $region48: #{roberta_gcn_forward.1} parent=1 // pred_region
      _
    $region49: #{roberta_gcn_forward.1} parent=1 // pred_fallthru
      _
    %1112 = vsyncpa [#allocation3], 1
    %1113 = vsyncpa [#allocation5], 1

</llo_original>
